<compile_context>
chip_gen: v7x
topology: tpu7x:2x2x1
jax: 0.10.0
libtpu: 0.0.40
codegen_flags: <defaults>
</compile_context>

<pallas_src>
import jax
import jax.numpy as jnp
from jax import lax
from jax.experimental import pallas as pl
from jax.experimental.pallas import tpu as pltpu


def _round_up(x: int, m: int) -> int:
    return ((x + m - 1) // m) * m


def _outer_kernel_2d(x1_ref, x2_ref, o_ref):
    # x1: (TK, TM), x2: (TK, TN); contract the batch dim (dim 0) on the MXU:
    #   o[i, j] = sum_b x1[b, i] * x2[b, j]  ==  x1^T @ x2
    o_ref[...] = lax.dot_general(
        x1_ref[...],
        x2_ref[...],
        dimension_numbers=(((0,), (0,)), ((), ())),
        preferred_element_type=jnp.float32,
    )


def _outer_kernel_3d(x1_ref, x2_ref, o_ref):
    # Same contraction, but the batch axis is tiled over grid axis 2
    # (innermost, "arbitrary").  Partial products accumulate directly into the
    # resident f32 output block -- no scratch accumulator, no final cast pass.
    partial = lax.dot_general(
        x1_ref[...],
        x2_ref[...],
        dimension_numbers=(((0,), (0,)), ((), ())),
        preferred_element_type=jnp.float32,
    )

    @pl.when(pl.program_id(2) == 0)
    def _init():
        o_ref[...] = partial

    @pl.when(pl.program_id(2) != 0)
    def _acc():
        o_ref[...] += partial


def sum_flattened_outer_product(input1: jax.Array, input2: jax.Array) -> jax.Array:
    """Pallas implementation of SumFlattenedOuterProduct.forward.

    input1: (B, D1), input2: (B, D2)  ->  (1, D1*D2)
    """
    B, D1 = input1.shape
    B2, D2 = input2.shape
    assert B == B2, "batch dims must match"
    orig_dtype = input1.dtype

    x1 = input1.astype(jnp.float32)
    x2 = input2.astype(jnp.float32)

    # ---- contraction (batch) axis: do NOT fragment it. ----
    TK_MAX = 1024
    if B <= TK_MAX:
        Bp, TK = B, B                      # single K step, full-extent block
    else:
        TK = 512
        Bp = _round_up(B, TK)              # zero padding is sum-neutral
    nk = Bp // TK

    # ---- output-tile axes: full extent when small, 512/1024 tiles when big.
    def _tile_dim(d, cap=1024):
        if d <= cap:
            return d, d                    # full-extent block, no padding
        t = 1024 if d >= 4096 else 512
        return _round_up(d, t), t

    D1p, TM = _tile_dim(D1)
    D2p, TN = _tile_dim(D2)
    nm, nn = D1p // TM, D2p // TN

    # v7x megacore: if the parallel grid would be (1,1) but the output is big
    # enough to amortize an extra grid step, split N so the 2nd TC gets work.
    if nm == 1 and nn == 1 and D2 >= 256 and D1 * D2 * 4 >= (2 << 20):
        D2p = _round_up(D2, 256)
        TN = D2p // 2
        nn = 2

    # ---- pad only what the tiling actually requires. ----
    if (Bp, D1p) != (B, D1):
        x1 = jnp.pad(x1, ((0, Bp - B), (0, D1p - D1)))
    if (Bp, D2p) != (B, D2):
        x2 = jnp.pad(x2, ((0, Bp - B), (0, D2p - D2)))

    cost = pl.CostEstimate(
        flops=2 * Bp * D1p * D2p,
        transcendentals=0,
        # inputs are re-read once per output tile along the opposite axis
        bytes_accessed=4 * (Bp * D1p * nn + Bp * D2p * nm + D1p * D2p),
    )
    cparams = pltpu.CompilerParams(
        dimension_semantics=(("parallel", "parallel", "arbitrary")
                             if nk > 1 else ("parallel", "parallel")),
        vmem_limit_bytes=48 * 1024 * 1024,   # safe on v5e/v6e (128 MiB) and v7x (64 MiB)
    )

    if nk == 1:
        grid_spec = pl.GridSpec(
            grid=(nm, nn),
            in_specs=[
                pl.BlockSpec((TK, TM), lambda i, j: (0, i)),
                pl.BlockSpec((TK, TN), lambda i, j: (0, j)),
            ],
            out_specs=pl.BlockSpec((TM, TN), lambda i, j: (i, j)),
        )
        kernel = _outer_kernel_2d
    else:
        grid_spec = pl.GridSpec(
            grid=(nm, nn, nk),
            in_specs=[
                pl.BlockSpec((TK, TM), lambda i, j, k: (k, i)),
                pl.BlockSpec((TK, TN), lambda i, j, k: (k, j)),
            ],
            out_specs=pl.BlockSpec((TM, TN), lambda i, j, k: (i, j)),
        )
        kernel = _outer_kernel_3d

    out = pl.pallas_call(
        kernel,
        out_shape=jax.ShapeDtypeStruct((D1p, D2p), jnp.float32),
        grid_spec=grid_spec,
        compiler_params=cparams,
        cost_estimate=cost,
    )(x1, x2)

    # Glue: drop padding (only if any), flatten, add leading dim.
    if (D1p, D2p) != (D1, D2):
        out = out[:D1, :D2]
    out = out.reshape(1, D1 * D2)
    if orig_dtype != jnp.float32:
        out = out.astype(orig_dtype)
    return out


if __name__ == "__main__":
    key = jax.random.PRNGKey(0)
    k1, k2, k3, k4, k5, k6 = jax.random.split(key, 6)
    HI = jax.lax.Precision.HIGHEST

    # Small shapes consistent with the module's forward: (batch, features).
    B, D1, D2 = 8, 16, 32
    a = jax.random.normal(k1, (B, D1), dtype=jnp.float32)
    b = jax.random.normal(k2, (B, D2), dtype=jnp.float32)
    out = jax.block_until_ready(sum_flattened_outer_product(a, b))
    ref = jnp.einsum("bi,bj->ij", a, b, precision=HI).reshape(1, D1 * D2)
    assert out.shape == (1, D1 * D2), out.shape
    assert jnp.allclose(out, ref, atol=1e-4, rtol=1e-4), "mismatch (small)"

    # Non-aligned dims: still the single-block fast path (no padding at all).
    B_, D1_, D2_ = 48, 160, 200
    a2 = jax.random.normal(k3, (B_, D1_), dtype=jnp.float32)
    b2 = jax.random.normal(k4, (B_, D2_), dtype=jnp.float32)
    out2 = jax.block_until_ready(sum_flattened_outer_product(a2, b2))
    ref2 = jnp.einsum("bi,bj->ij", a2, b2, precision=HI).reshape(1, D1_ * D2_)
    assert out2.shape == (1, D1_ * D2_), out2.shape
    assert jnp.allclose(out2, ref2, atol=1e-3, rtol=1e-4), "mismatch (medium)"

    # Large batch: exercises K tiling (3-D grid), zero padding, and direct
    # accumulation into the resident output block.
    Bk, D1k, D2k = 1500, 64, 72
    a3 = jax.random.normal(k5, (Bk, D1k), dtype=jnp.float32)
    b3 = jax.random.normal(k6, (Bk, D2k), dtype=jnp.float32)
    out3 = jax.block_until_ready(sum_flattened_outer_product(a3, b3))
    ref3 = jnp.einsum("bi,bj->ij", a3, b3, precision=HI).reshape(1, D1k * D2k)
    assert out3.shape == (1, D1k * D2k), out3.shape
    assert jnp.allclose(out3, ref3, atol=5e-2, rtol=1e-3), "mismatch (tiled K)"

    print("KERNEL_OK")
</pallas_src>

<mosaic_0001>
module attributes {stable_mosaic.version = 11 : i64} {
  func.func @_outer_kernel_2d(%arg0: i32, %arg1: i32, %arg2: memref<8x16xf32, #tpu.memory_space<vmem>>, %arg3: memref<8x32xf32, #tpu.memory_space<vmem>>, %arg4: memref<16x32xf32, #tpu.memory_space<vmem>>) attributes {dimension_semantics = [#tpu.dimension_semantics<parallel>, #tpu.dimension_semantics<parallel>], iteration_bounds = array<i64: 1, 1>, scalar_prefetch = 0 : i64, scratch_operands = 0 : i64, tpu.core_type = #tpu.core_type<tc>, window_params = [{transform_indices = @transform_0, window_bounds = array<i64: 8, 16>}, {transform_indices = @transform_1, window_bounds = array<i64: 8, 32>}, {transform_indices = @transform_2, window_bounds = array<i64: 16, 32>}]} {
    %c0 = arith.constant 0 : index
    %c0_0 = arith.constant 0 : index
    %0 = vector.load %arg2[%c0, %c0_0] : memref<8x16xf32, #tpu.memory_space<vmem>>, vector<8x16xf32>
    %c0_1 = arith.constant 0 : index
    %c0_2 = arith.constant 0 : index
    %1 = vector.load %arg3[%c0_1, %c0_2] : memref<8x32xf32, #tpu.memory_space<vmem>>, vector<8x32xf32>
    %cst = arith.constant dense<0.000000e+00> : vector<16x32xf32>
    %2 = tpu.matmul %0, %1, %cst {dimension_numbers = #tpu.dot_dimension_numbers<[0], [0], [1], [1], [0, 1, 1, 1], [], []>} : vector<8x16xf32>, vector<8x32xf32>, vector<16x32xf32> -> vector<16x32xf32>
    %c0_3 = arith.constant 0 : index
    %c0_4 = arith.constant 0 : index
    %3 = vector.load %arg4[%c0_3, %c0_4] : memref<16x32xf32, #tpu.memory_space<vmem>>, vector<16x32xf32>
    tpu.vector_store %arg4[%c0_3, %c0_4], %2 {strides = array<i32>} : memref<16x32xf32, #tpu.memory_space<vmem>>, vector<16x32xf32>,
    return
  }
  func.func @transform_0(%arg0: i32, %arg1: i32) -> (i32, i32) {
    %c0_i32 = arith.constant 0 : i32
    %c0_i32_0 = arith.constant 0 : i32
    return %c0_i32, %arg0 : i32, i32
  }
  func.func @transform_1(%arg0: i32, %arg1: i32) -> (i32, i32) {
    %c0_i32 = arith.constant 0 : i32
    %c0_i32_0 = arith.constant 0 : i32
    return %c0_i32, %arg1 : i32, i32
  }
  func.func @transform_2(%arg0: i32, %arg1: i32) -> (i32, i32) {
    %c0_i32 = arith.constant 0 : i32
    return %arg0, %arg1 : i32, i32
  }
}

</mosaic_0001>

<llo_original>
// kernel: tpu_custom_call.1
$region0: #{tpu_custom_call.1}
  #allocation0 [shape = 'u32[]', space=smem, size = 0x4, offset = 0x4, fixed_abs, tag = 'smem constant byte address 0x4 - core index']
  #allocation1 [shape = 'u32[144,128]{1,0:T(1,128)}', space=vmem, size = 0x12000, scoped, tag = 'internal scratch']
  %s0 = inlined_call_operand.hbm [shape: f32[8,16], index: 0, kind: input, shape index: {}]
  %s1 = inlined_call_operand.hbm [shape: f32[8,32], index: 1, kind: input, shape index: {}]
  %s2 = inlined_call_operand.hbm [shape: f32[16,32], index: 2, kind: output, shape index: {}]
  %s3 = sld [smem:[#allocation0]]
  $region26: #{tpu_custom_call.1} parent=0
    _
  %s5 = ssub.s32 1, %s3
  %s6 = scalar_select 0, %s5, %s3
  $region1: #{tpu_custom_call.1} parent=0
    #allocation2 [shape = 'u8[4096]{0}', space=vmem, size = 0x1000, scoped, tag = 'input window, operand 0, single buffered']
    #allocation3 [shape = 's32[1]{0}', space=sflag, size = 0x4, scoped, tag = 'scoped memory for tpu_custom_call.1']
    #allocation4 [shape = 's32[1]{0}', space=sflag, size = 0x4, scoped, tag = 'scoped memory for tpu_custom_call.1']
    #allocation5 [shape = 'u8[4096]{0}', space=vmem, size = 0x1000, scoped, tag = 'input window, operand 1, single buffered']
    #allocation6 [shape = 's32[1]{0}', space=sflag, size = 0x4, scoped, tag = 'scoped memory for tpu_custom_call.1']
    #allocation7 [shape = 'u8[8192]{0}', space=vmem, size = 0x2000, scoped, tag = 'output window, operand 0, single buffered']
    %7 = vsyncpa [#allocation3], 0
    %8 = vsyncpa [#allocation6], 0
    %9 = vsyncpa [#allocation4], 0
    // Predicated region
    $region2: #{tpu_custom_call.1} parent=1 // pred_check
      _
    $region3: #{tpu_custom_call.1} parent=1 // pred_check_branch
      %11 = sbr.rel (0) target = $region5
    $region4: #{tpu_custom_call.1} parent=1 // pred_region
      %s13 = ssub.s32 128, 128
      %14 = vsyncadd [#allocation3], %s13
      %s16 = sshll.u32 [#allocation2], 4
      %s17 = int_to_ptr.vmem [resolvable:$true] %s16
      %19 = dma.hbm_to_vmem [thread:$0]  %s0, 128, %s17, [#allocation3]
    $region5: #{tpu_custom_call.1} parent=1 // pred_fallthru
      _
    // Predicated region
    $region6: #{tpu_custom_call.1} parent=1 // pred_check
      _
    $region7: #{tpu_custom_call.1} parent=1 // pred_check_branch
      %21 = sbr.rel (0) target = $region9
    $region8: #{tpu_custom_call.1} parent=1 // pred_region
      %s23 = ssub.s32 128, 128
      %24 = vsyncadd [#allocation6], %s23
      %s26 = sshll.u32 [#allocation5], 4
      %s27 = int_to_ptr.vmem [resolvable:$true] %s26
      %29 = dma.hbm_to_vmem [thread:$0]  %s1, 128, %s27, [#allocation6]
    $region9: #{tpu_custom_call.1} parent=1 // pred_fallthru
      _
    // Predicated region
    $region10: #{tpu_custom_call.1} parent=1 // pred_check
      _
    $region11: #{tpu_custom_call.1} parent=1 // pred_check_branch
      %31 = sbr.rel (0) target = $region13
    $region12: #{tpu_custom_call.1} parent=1 // pred_region
      %32 = dma.done [#allocation3], 128
    $region13: #{tpu_custom_call.1} parent=1 // pred_fallthru
      _
    // Predicated region
    $region14: #{tpu_custom_call.1} parent=1 // pred_check
      _
    $region15: #{tpu_custom_call.1} parent=1 // pred_check_branch
      %34 = sbr.rel (0) target = $region17
    $region16: #{tpu_custom_call.1} parent=1 // pred_region
      %35 = dma.done [#allocation6], 128
    $region17: #{tpu_custom_call.1} parent=1 // pred_fallthru
      _
    %v36 = vld [vmem:[#allocation2] sm:$0xff]
    %v37 = vld [vmem:[#allocation5] sm:$0xff]
    %38 = vxpose.xlu0.b32.start [1/16] %v36, 128
    %39 = vxpose.xlu0.b32.cont [2/16] 0.0, 128
    %40 = vxpose.xlu0.b32.cont [3/16] 0.0, 128
    %41 = vxpose.xlu0.b32.cont [4/16] 0.0, 128
    %42 = vxpose.xlu0.b32.cont [5/16] 0.0, 128
    %43 = vxpose.xlu0.b32.cont [6/16] 0.0, 128
    %44 = vxpose.xlu0.b32.cont [7/16] 0.0, 128
    %45 = vxpose.xlu0.b32.cont [8/16] 0.0, 128
    %46 = vxpose.xlu0.b32.cont [9/16] 0.0, 128
    %47 = vxpose.xlu0.b32.cont [10/16] 0.0, 128
    %48 = vxpose.xlu0.b32.cont [11/16] 0.0, 128
    %49 = vxpose.xlu0.b32.cont [12/16] 0.0, 128
    %50 = vxpose.xlu0.b32.cont [13/16] 0.0, 128
    %51 = vxpose.xlu0.b32.cont [14/16] 0.0, 128
    %52 = vxpose.xlu0.b32.cont [15/16] 0.0, 128
    %53 = vxpose.xlu0.b32.end [16/16] 0.0, 128
    %v54 = vpop.trf.xlu0
    %v55 = vpop.trf.xlu0
    %v56 = vpop.trf.xlu0
    %v57 = vpop.trf.xlu0
    %v58 = vpop.trf.xlu0
    %v59 = vpop.trf.xlu0
    %v60 = vpop.trf.xlu0
    %v61 = vpop.trf.xlu0
    %v62 = vpop.trf.xlu0
    %v63 = vpop.trf.xlu0
    %v64 = vpop.trf.xlu0
    %v65 = vpop.trf.xlu0
    %v66 = vpop.trf.xlu0
    %v67 = vpop.trf.xlu0
    %v68 = vpop.trf.xlu0
    %v69 = vpop.trf.xlu0
    %vm70 = vcmask 64512
    %v72 = vsel %vm70, %v54, 0
    %v75 = vsel %vm70, %v55, 0
    %77 = vmatprep.subr.mxu0 0.0
    %78 = vmatpush1.msra.mxu0 %v37
    %79 = vmatprep.subr.mxu0 0.0
    %80 = vmatpush1.msra.mxu0 0.0
    %81 = vmatprep.subr.mxu0 0.0
    %82 = vmatpush1.msra.mxu0 0.0
    %83 = vmatprep.subr.mxu0 0.0
    %84 = vmatpush1.msra.mxu0 0.0
    %85 = vmatprep.subr.mxu0 0.0
    %86 = vmatpush1.msra.mxu0 0.0
    %87 = vmatprep.subr.mxu0 0.0
    %88 = vmatpush1.msra.mxu0 0.0
    %89 = vmatprep.subr.mxu0 0.0
    %90 = vmatpush1.msra.mxu0 0.0
    %91 = vmatprep.subr.mxu0 0.0
    %92 = vmatpush1.msra.mxu0 0.0
    %93 = vmatprep.subr.mxu0 0.0
    %94 = vmatpush1.msra.mxu0 0.0
    %95 = vmatprep.subr.mxu0 0.0
    %96 = vmatpush1.msra.mxu0 0.0
    %97 = vmatprep.subr.mxu0 0.0
    %98 = vmatpush1.msra.mxu0 0.0
    %99 = vmatprep.subr.mxu0 0.0
    %100 = vmatpush1.msra.mxu0 0.0
    %101 = vmatprep.subr.mxu0 0.0
    %102 = vmatpush1.msra.mxu0 0.0
    %103 = vmatprep.subr.mxu0 0.0
    %104 = vmatpush1.msra.mxu0 0.0
    %105 = vmatprep.subr.mxu0 0.0
    %106 = vmatpush1.msra.mxu0 0.0
    %107 = vmatprep.subr.mxu0 0.0
    %108 = vmatpush1.msra.mxu0 0.0
    %109 = vmatprep.subr.mxu0 0.0
    %110 = vmatpush1.msra.mxu0 0.0
    %111 = vmatprep.subr.mxu0 0.0
    %112 = vmatpush1.msra.mxu0 0.0
    %113 = vmatprep.subr.mxu0 0.0
    %114 = vmatpush1.msra.mxu0 0.0
    %115 = vmatprep.subr.mxu0 0.0
    %116 = vmatpush1.msra.mxu0 0.0
    %117 = vmatprep.subr.mxu0 0.0
    %118 = vmatpush1.msra.mxu0 0.0
    %119 = vmatprep.subr.mxu0 0.0
    %120 = vmatpush1.msra.mxu0 0.0
    %121 = vmatprep.subr.mxu0 0.0
    %122 = vmatpush1.msra.mxu0 0.0
    %123 = vmatprep.subr.mxu0 0.0
    %124 = vmatpush1.msra.mxu0 0.0
    %125 = vmatprep.subr.mxu0 0.0
    %126 = vmatpush1.msra.mxu0 0.0
    %127 = vmatprep.subr.mxu0 0.0
    %128 = vmatpush1.msra.mxu0 0.0
    %129 = vmatprep.subr.mxu0 0.0
    %130 = vmatpush1.msra.mxu0 0.0
    %131 = vmatprep.subr.mxu0 0.0
    %132 = vmatpush1.msra.mxu0 0.0
    %133 = vmatprep.subr.mxu0 0.0
    %134 = vmatpush1.msra.mxu0 0.0
    %135 = vmatprep.subr.mxu0 0.0
    %136 = vmatpush1.msra.mxu0 0.0
    %137 = vmatprep.subr.mxu0 0.0
    %138 = vmatpush1.msra.mxu0 0.0
    %139 = vmatprep.subr.mxu0 0.0
    %140 = vmatpush1.msra.mxu0 0.0
    %141 = vmatprep.mubr.f32.mxu0 0.0
    %142 = vmatmul.mubr.f32.gmra.mrb[0].mxu0 %v72
    %v143 = vpop.f32.mrb[0].mxu0
    %v144 = vadd.f32 0.0, %v143
    %v145 = vpop.f32.mrb[0].mxu0
    %146 = vmatprep.mubr.f32.mxu0 0.0
    %147 = vmatmul.mubr.f32.gmra.mrb[0].mxu0 %v75
    %v148 = vpop.f32.mrb[0].mxu0
    %v149 = vadd.f32 0.0, %v148
    %v150 = vpop.f32.mrb[0].mxu0
    %151 = vdwg.mxu0
    %vm152 = vcmask 261120
    %153 = vst.msk [vmem:[#allocation7] sm:$0xff] %vm152, %v144
    %154 = vst.msk [vmem:[#allocation7 + $0x8] sm:$0xff] %vm152, %v149
    // Predicated region
    $region18: #{tpu_custom_call.1} parent=1 // pred_check
      _
    $region19: #{tpu_custom_call.1} parent=1 // pred_check_branch
      %156 = sbr.rel (0) target = $region21
    $region20: #{tpu_custom_call.1} parent=1 // pred_region
      %s158 = ssub.s32 256, 256
      %159 = vsyncadd [#allocation4], %s158
      %s160 = sshll.u32 [#allocation7], 4
      %s161 = int_to_ptr.vmem [resolvable:$true] %s160
      %166 = dma.vmem_to_hbm [thread:$0]  %s161, 256, %s2, [#allocation4], 128, 128, 8
    $region21: #{tpu_custom_call.1} parent=1 // pred_fallthru
      _
    // Predicated region
    $region22: #{tpu_custom_call.1} parent=1 // pred_check
      _
    $region23: #{tpu_custom_call.1} parent=1 // pred_check_branch
      %168 = sbr.rel (0) target = $region25
    $region24: #{tpu_custom_call.1} parent=1 // pred_region
      %169 = dma.done [#allocation4], 256
    $region25: #{tpu_custom_call.1} parent=1 // pred_fallthru
      _
    %170 = vsyncpa [#allocation3], 1
    %171 = vsyncpa [#allocation6], 1
    %172 = vsyncpa [#allocation4], 1

</llo_original>
